<compile_context>
chip_gen: v7x
topology: tpu7x:2x2x1
jax: 0.10.0
libtpu: 0.0.40
codegen_flags: <defaults>
</compile_context>

<pallas_src>
import functools
import math

import jax
import jax.numpy as jnp
from jax.experimental import pallas as pl
from jax.experimental.pallas import tpu as pltpu

_LANE = 128
_SUBLANE = 8


@functools.lru_cache(maxsize=None)
def _tpu_hw():
    """Best-effort (vmem_capacity_bytes, tensorcores_per_chip) query."""
    vmem = 0
    try:
        info = pltpu.get_tpu_info()
        vmem = int(getattr(info, "vmem_capacity_bytes", 0) or 0)
    except Exception:
        vmem = 0
    kind = ""
    try:
        kind = jax.devices()[0].device_kind.lower()
    except Exception:
        kind = ""
    if vmem <= 0:
        # Fallback: v5e/v6e have 128 MiB VMEM; assume the smallest (v7x,
        # 64 MiB) otherwise so the tiling stays conservative.
        vmem = (128 << 20) if ("v5" in kind or "v6" in kind) else (64 << 20)
    # v7x pairs two TensorCores per chip (each with 64 MiB VMEM); v5e/v6e are
    # single-core 128 MiB chips. Use both signals.
    multi_tc = ("7" in kind) or vmem <= (96 << 20)
    return vmem, (2 if multi_tc else 1)


def _linear_act_kernel(x_ref, w_ref, b_ref, o_ref, acc_ref, *, activation):
    """One (tm, tn) output tile, accumulating over the K grid axis (axis 2)."""
    k = pl.program_id(2)

    @pl.when(k == 0)
    def _():
        # Fold the bias into the accumulator init (saves an epilogue add and
        # a per-tile bias read on the last K step).
        acc_ref[...] = jnp.broadcast_to(
            b_ref[...].astype(jnp.float32), acc_ref.shape
        )

    acc_ref[...] += jnp.dot(
        x_ref[...], w_ref[...], preferred_element_type=jnp.float32
    )

    @pl.when(k == pl.num_programs(2) - 1)
    def _():
        y = acc_ref[...]
        if activation == "relu":
            y = jnp.maximum(y, 0.0)
        elif activation == "tanh":
            y = jnp.tanh(y)
        o_ref[...] = y.astype(o_ref.dtype)


def _tail_kernel(x_ref, w4_ref, b4_ref, w5_ref, b5_ref, o_ref):
    """Fused fc2(+ReLU) -> fc3(+tanh); all operands resident in VMEM."""
    h = jnp.dot(x_ref[...], w4_ref[...], preferred_element_type=jnp.float32)
    h = jnp.maximum(h + b4_ref[...], 0.0)
    y = jnp.dot(
        h.astype(w5_ref.dtype), w5_ref[...], preferred_element_type=jnp.float32
    )
    o_ref[...] = jnp.tanh(y + b5_ref[...]).astype(o_ref.dtype)


def _pick_tile(dim, target, quantum):
    """Largest multiple of `quantum` dividing `dim`, <= target (else full dim)."""
    if dim <= target:
        return dim
    t = (target // quantum) * quantum
    while t >= quantum:
        if dim % t == 0:
            return t
        t -= quantum
    return dim


def _divisor_tiles(dim, quantum):
    """Divisors of `dim` that are multiples of `quantum` (descending), plus the
    full dimension itself (always a legal block size) as a fallback."""
    tiles = [t for t in range(quantum, dim + 1, quantum) if dim % t == 0]
    tiles.append(dim)
    return sorted(set(tiles), reverse=True)


def _choose_tiles(M, K, N, x_bytes, w_bytes, o_bytes, budget, num_tc):
    """Pick (tm, tk, tn) under the VMEM tile budget.

    Single-TC chips (v5e/v6e): prefer tn = N (full-width, fully contiguous
    weight DMAs, no j axis), then the largest fitting tk.
    Multi-TC chips (v7x): prefer tn whose block count N//tn splits evenly
    across the cores, then the widest such tn, then the largest fitting tk.
    """
    tm = _pick_tile(M, 256, _SUBLANE)

    def need(tk, tn):
        return (
            2 * tm * tk * x_bytes      # double-buffered x tiles
            + 2 * tk * tn * w_bytes    # double-buffered weight tiles
            + 2 * tn * 4               # double-buffered f32 bias rows
            + 2 * tm * tn * o_bytes    # double-buffered output tiles
            + tm * tn * 4              # f32 accumulator scratch
        )

    tk_candidates = _divisor_tiles(K, _LANE)
    best = None
    for tn in _divisor_tiles(N, _LANE):
        j_blocks = N // tn
        even = (num_tc == 1) or (j_blocks % num_tc == 0)
        tk = next((t for t in tk_candidates if need(t, tn) <= budget), None)
        if tk is None:
            continue
        score = (even, tn, tk)
        if best is None or score > best[0]:
            best = (score, tm, tk, tn, need(tk, tn))
    if best is None:
        raise ValueError(
            "no (tk, tn) tiling of a (%d,%d)x(%d,%d) matmul fits the %d MiB "
            "VMEM tile budget" % (M, K, K, N, budget >> 20)
        )
    return best[1], best[2], best[3], best[4]


def linear_act(x, w, b, activation, out_dtype=jnp.bfloat16):
    """y = activation(x @ w + b) via a K-tiled Pallas matmul kernel.

    x: (M, K) bf16, w: (K, N) bf16 (transpose of nn.Linear), b: (N,) f32.
    Accumulation is f32 on the MXU.
    """
    M, K = x.shape
    K2, N = w.shape
    assert K == K2 and b.shape == (N,)

    vmem_bytes, num_tc = _tpu_hw()
    if num_tc > 1:
        # v7x: 64 MiB physical VMEM per core; leave room for internals.
        budget = min(vmem_bytes - (20 << 20), 44 << 20)
    else:
        # v5e/v6e: 128 MiB physical; spend it on wide contiguous weight tiles.
        budget = min(vmem_bytes - (32 << 20), 96 << 20)
    budget = max(budget, 16 << 20)

    tm, tk, tn, need = _choose_tiles(
        M, K, N,
        jnp.dtype(x.dtype).itemsize,
        jnp.dtype(w.dtype).itemsize,
        jnp.dtype(out_dtype).itemsize,
        budget, num_tc,
    )

    # Hardware-derived vmem_limit ceiling (never above physical capacity).
    vmem_cap = vmem_bytes - (8 << 20)
    assert need <= vmem_cap, (need, vmem_cap)
    vmem_limit = int(min(max(need + (8 << 20), 32 << 20), vmem_cap))

    b2 = b.reshape(1, N).astype(jnp.float32)
    kernel = functools.partial(_linear_act_kernel, activation=activation)

    return pl.pallas_call(
        kernel,
        out_shape=jax.ShapeDtypeStruct((M, N), out_dtype),
        grid_spec=pltpu.PrefetchScalarGridSpec(
            num_scalar_prefetch=0,
            grid=(M // tm, N // tn, K // tk),
            in_specs=[
                pl.BlockSpec((tm, tk), lambda i, j, k: (i, k)),
                pl.BlockSpec((tk, tn), lambda i, j, k: (k, j)),
                pl.BlockSpec((1, tn), lambda i, j, k: (0, j)),
            ],
            out_specs=pl.BlockSpec((tm, tn), lambda i, j, k: (i, j)),
            scratch_shapes=[pltpu.VMEM((tm, tn), jnp.float32)],
        ),
        compiler_params=pltpu.CompilerParams(
            dimension_semantics=("parallel", "parallel", "arbitrary"),
            vmem_limit_bytes=vmem_limit,
        ),
    )(x, w, b2)


def fused_tail(x, w4, b4, w5, b5):
    """Fused fc2 (ReLU) + fc3 (tanh): weights are tiny, keep all in VMEM."""
    M = x.shape[0]
    N = w5.shape[1]
    return pl.pallas_call(
        _tail_kernel,
        out_shape=jax.ShapeDtypeStruct((M, N), jnp.float32),
    )(
        x,
        w4,
        b4.reshape(1, -1).astype(jnp.float32),
        w5,
        b5.reshape(1, -1).astype(jnp.float32),
    )


def init_discriminator_params(key, layer_dims, weight_dtype=jnp.bfloat16):
    """Xavier-uniform weights (gain=1), zero bias, matching weights_init_.

    Weights are stored as (in, out) = transpose of PyTorch's (out, in) layout
    and cast once to bf16 (the kernels accumulate in f32 on the MXU).
    """
    params = []
    for fan_in, fan_out in zip(layer_dims[:-1], layer_dims[1:]):
        key, sub = jax.random.split(key)
        bound = math.sqrt(6.0 / (fan_in + fan_out))
        w = jax.random.uniform(
            sub, (fan_in, fan_out), jnp.float32, minval=-bound, maxval=bound
        ).astype(weight_dtype)
        b = jnp.zeros((fan_out,), jnp.float32)
        params.append((w, b))
    return params


def discriminator_forward(params, inputs):
    """Forward pass matching Discriminator.forward (ReLU x4, tanh head)."""
    (w1, b1), (w2, b2), (w3, b3), (w4, b4), (w5, b5) = params
    M = inputs.shape[0]
    # Pad the batch to a full sublane group so output stores are unmasked and
    # the dominant weight stream is amortised over >= 8 rows (free when
    # bandwidth-bound).
    m_pad = max(_SUBLANE, ((M + _SUBLANE - 1) // _SUBLANE) * _SUBLANE)
    x = inputs.astype(jnp.bfloat16)
    if m_pad != M:
        x = jnp.pad(x, ((0, m_pad - M), (0, 0)))

    d = linear_act(x, w1, b1, "relu")   # fc1_1 + ReLU
    d = linear_act(d, w2, b2, "relu")   # fc1_2 + ReLU
    d = linear_act(d, w3, b3, "relu")   # fc1_3 + ReLU
    d = fused_tail(d, w4, b4, w5, b5)   # fc2 + ReLU, fc3 + tanh (fused)
    return d[:M]


if __name__ == "__main__":
    # Small demo shapes. The real module uses hidden dims
    # (20480, 20480, 2048, 256, 2); the same kernels handle those sizes
    # (on v7x: tn=10240/1024 so the parallel axis splits evenly across both
    # TensorCores; on v5e/v6e: tn = full N with tk~1024 for contiguous weight
    # DMAs under a ~96 MiB VMEM budget). We scale the big hidden dims down to
    # keep the demo quick.
    batch = 2
    state_dim, action_dim = 24, 8
    in_dim = state_dim + action_dim
    layer_dims = [in_dim, 1024, 1024, 512, 256, 2]

    key = jax.random.PRNGKey(0)
    key, pkey, xkey = jax.random.split(key, 3)
    params = init_discriminator_params(pkey, layer_dims)
    x = jax.random.normal(xkey, (batch, in_dim), jnp.float32)

    out = jax.block_until_ready(discriminator_forward(params, x))
    assert out.shape == (batch, 2)
    assert bool(jnp.all(jnp.isfinite(out)))

    # Pure-JAX reference with the same bf16 weight / activation dtypes.
    def ref_forward(ps, inp):
        h = inp.astype(jnp.bfloat16)
        acts = ["relu"] * 4 + ["tanh"]
        for (w, b), act in zip(ps, acts):
            y = jnp.dot(h.astype(jnp.float32), w.astype(jnp.float32)) + b
            if act == "relu":
                h = jnp.maximum(y, 0.0).astype(jnp.bfloat16)
            else:
                h = jnp.tanh(y)
        return h

    ref = jax.block_until_ready(ref_forward(params, x))
    assert bool(jnp.allclose(out, ref, atol=2e-2, rtol=2e-2))
    print("KERNEL_OK")
</pallas_src>

<mosaic_0001>
module attributes {stable_mosaic.version = 11 : i64} {
  func.func @_linear_act_kernel(%arg0: i32, %arg1: i32, %arg2: i32, %arg3: memref<8x32xbf16, #tpu.memory_space<vmem>>, %arg4: memref<32x512xbf16, #tpu.memory_space<vmem>>, %arg5: memref<1x512xf32, #tpu.memory_space<vmem>>, %arg6: memref<8x512xbf16, #tpu.memory_space<vmem>>, %arg7: memref<8x512xf32, #tpu.memory_space<vmem>>) attributes {dimension_semantics = [#tpu.dimension_semantics<parallel>, #tpu.dimension_semantics<parallel>, #tpu.dimension_semantics<arbitrary>], iteration_bounds = array<i64: 1, 2, 1>, scalar_prefetch = 0 : i64, scratch_operands = 1 : i64, tpu.core_type = #tpu.core_type<tc>, window_params = [{transform_indices = @transform_0, window_bounds = array<i64: 8, 32>}, {transform_indices = @transform_1, window_bounds = array<i64: 32, 512>}, {transform_indices = @transform_2, window_bounds = array<i64: 1, 512>}, {transform_indices = @transform_3, window_bounds = array<i64: 8, 512>}]} {
    %c0_i32 = arith.constant 0 : i32
    %0 = arith.cmpi eq, %arg2, %c0_i32 : i32
    %1 = arith.extui %0 : i1 to i32
    %c0_i32_0 = arith.constant 0 : i32
    %2 = arith.cmpi ne, %1, %c0_i32_0 : i32
    scf.if %2 {
      %c0_10 = arith.constant 0 : index
      %c0_11 = arith.constant 0 : index
      %12 = vector.load %arg5[%c0_10, %c0_11] : memref<1x512xf32, #tpu.memory_space<vmem>>, vector<1x512xf32>
      %13 = vector.shape_cast %12 : vector<1x512xf32> to vector<1x512xf32>
      %14 = vector.broadcast %13 : vector<1x512xf32> to vector<8x512xf32>
      %c0_12 = arith.constant 0 : index
      %c0_13 = arith.constant 0 : index
      %15 = vector.load %arg7[%c0_12, %c0_13] : memref<8x512xf32, #tpu.memory_space<vmem>>, vector<8x512xf32>
      tpu.vector_store %arg7[%c0_12, %c0_13], %14 {strides = array<i32>} : memref<8x512xf32, #tpu.memory_space<vmem>>, vector<8x512xf32>,
    } else {
    }
    %c0 = arith.constant 0 : index
    %c0_1 = arith.constant 0 : index
    %3 = vector.load %arg7[%c0, %c0_1] : memref<8x512xf32, #tpu.memory_space<vmem>>, vector<8x512xf32>
    %c0_2 = arith.constant 0 : index
    %c0_3 = arith.constant 0 : index
    %4 = vector.load %arg3[%c0_2, %c0_3] : memref<8x32xbf16, #tpu.memory_space<vmem>>, vector<8x32xbf16>
    %c0_4 = arith.constant 0 : index
    %c0_5 = arith.constant 0 : index
    %5 = vector.load %arg4[%c0_4, %c0_5] : memref<32x512xbf16, #tpu.memory_space<vmem>>, vector<32x512xbf16>
    %cst = arith.constant dense<0.000000e+00> : vector<8x512xf32>
    %6 = tpu.matmul %4, %5, %cst {dimension_numbers = #tpu.dot_dimension_numbers<[1], [0], [0], [1], [0, 0, 1, 1], [], []>} : vector<8x32xbf16>, vector<32x512xbf16>, vector<8x512xf32> -> vector<8x512xf32>
    %7 = arith.addf %3, %6 : vector<8x512xf32>
    %c0_6 = arith.constant 0 : index
    %c0_7 = arith.constant 0 : index
    %8 = vector.load %arg7[%c0_6, %c0_7] : memref<8x512xf32, #tpu.memory_space<vmem>>, vector<8x512xf32>
    tpu.vector_store %arg7[%c0_6, %c0_7], %7 {strides = array<i32>} : memref<8x512xf32, #tpu.memory_space<vmem>>, vector<8x512xf32>,
    %c0_i32_8 = arith.constant 0 : i32
    %9 = arith.cmpi eq, %arg2, %c0_i32_8 : i32
    %10 = arith.extui %9 : i1 to i32
    %c0_i32_9 = arith.constant 0 : i32
    %11 = arith.cmpi ne, %10, %c0_i32_9 : i32
    scf.if %11 {
      %c0_10 = arith.constant 0 : index
      %c0_11 = arith.constant 0 : index
      %12 = vector.load %arg7[%c0_10, %c0_11] : memref<8x512xf32, #tpu.memory_space<vmem>>, vector<8x512xf32>
      %cst_12 = arith.constant 0.000000e+00 : f32
      %13 = vector.broadcast %cst_12 : f32 to vector<8x512xf32>
      %14 = arith.maximumf %12, %13 : vector<8x512xf32>
      %15 = arith.truncf %14 : vector<8x512xf32> to vector<8x512xbf16>
      %c0_13 = arith.constant 0 : index
      %c0_14 = arith.constant 0 : index
      %16 = vector.load %arg6[%c0_13, %c0_14] : memref<8x512xbf16, #tpu.memory_space<vmem>>, vector<8x512xbf16>
      tpu.vector_store %arg6[%c0_13, %c0_14], %15 {strides = array<i32>} : memref<8x512xbf16, #tpu.memory_space<vmem>>, vector<8x512xbf16>,
    } else {
    }
    return
  }
  func.func @transform_0(%arg0: i32, %arg1: i32, %arg2: i32) -> (i32, i32) {
    %c0_i32 = arith.constant 0 : i32
    return %arg0, %arg2 : i32, i32
  }
  func.func @transform_1(%arg0: i32, %arg1: i32, %arg2: i32) -> (i32, i32) {
    %c0_i32 = arith.constant 0 : i32
    return %arg2, %arg1 : i32, i32
  }
  func.func @transform_2(%arg0: i32, %arg1: i32, %arg2: i32) -> (i32, i32) {
    %c0_i32 = arith.constant 0 : i32
    %c0_i32_0 = arith.constant 0 : i32
    return %c0_i32, %arg1 : i32, i32
  }
  func.func @transform_3(%arg0: i32, %arg1: i32, %arg2: i32) -> (i32, i32) {
    %c0_i32 = arith.constant 0 : i32
    return %arg0, %arg1 : i32, i32
  }
}

</mosaic_0001>

<llo_original>
// kernel: tpu_custom_call.1
$region0: #{tpu_custom_call.1}
  #allocation0 [shape = 'u32[]', space=smem, size = 0x4, offset = 0x4, fixed_abs, tag = 'smem constant byte address 0x4 - core index']
  #allocation1 [shape = 'u32[144,128]{1,0:T(1,128)}', space=vmem, size = 0x12000, scoped, tag = 'internal scratch']
  #allocation2 [shape = 'f32[8,512]{1,0:T(8,128)}', space=vmem, size = 0x4000, scoped, tag = 'scratch operand']
  %s0 = inlined_call_operand.hbm [shape: bf16[8,32], index: 0, kind: input, shape index: {}]
  %s1 = inlined_call_operand.hbm [shape: bf16[32,1024], index: 1, kind: input, shape index: {}]
  %s2 = inlined_call_operand.hbm [shape: f32[1,1024], index: 2, kind: input, shape index: {}]
  %s3 = inlined_call_operand.hbm [shape: bf16[8,1024], index: 3, kind: output, shape index: {}]
  %s4 = sld [smem:[#allocation0]]
  $region65: #{tpu_custom_call.1} parent=0
    _
  %s6 = ssub.s32 1, %s4
  %s7 = scalar_select 0, %s6, %s4
  $region1: #{tpu_custom_call.1} parent=0
    #allocation3 [shape = 'u8[2048]{0}', space=vmem, size = 0x800, scoped, tag = 'input window, operand 0, single buffered']
    #allocation4 [shape = 's32[2]{0}', space=sflag, size = 0x8, scoped, tag = 'scoped memory for tpu_custom_call.1']
    #allocation5 [shape = 's32[2]{0}', space=sflag, size = 0x8, scoped, tag = 'scoped memory for tpu_custom_call.1']
    #allocation6 [shape = 'u8[65536]{0}', space=vmem, size = 0x10000, scoped, tag = 'input window, operand 1']
    #allocation7 [shape = 's32[2]{0}', space=sflag, size = 0x8, scoped, tag = 'scoped memory for tpu_custom_call.1']
    #allocation8 [shape = 'u8[4096]{0}', space=vmem, size = 0x1000, scoped, tag = 'input window, operand 2']
    #allocation9 [shape = 'u8[16384]{0}', space=vmem, size = 0x4000, scoped, tag = 'output window, operand 0']
    %8 = vsyncpa [#allocation4], 0
    %9 = vsyncpa [#allocation7], 0
    %s10 = scalar_lea.sflag [#allocation7], 1
    %11 = vsyncpa %s10, 0
    %12 = vsyncpa [#allocation5], 0
    %s13 = scalar_lea.sflag [#allocation5], 1
    %14 = vsyncpa %s13, 0
    loop: start=0, step=1, limit=4
    $region2: #{tpu_custom_call.1} parent=1 // loop_pre_header
      _
    $region3: #{tpu_custom_call.1} parent=1 // loop_header
      %s16 = sphi 0, %s20
      %p17 = scmp.ge.s32.totalorder %s16, 4
      %s23 = sphi 0, %s42
      %s24 = sphi 0, %s38
      %s25 = sphi 0, %s34
      %s26 = sphi 0, %s23
      %s27 = sphi 0, %s24
      %s28 = sphi 0, %s25
      %s29 = sphi 0, %s26
      %s30 = sphi 0, %s27
      %s31 = sphi 0, %s28
      %s47 = sphi 0, %s49
      %s50 = sphi 0, %s47
      %s51 = sphi 0, %s50
      %s67 = sphi 0, %s51
      %s75 = sphi 0, %s77
      %s78 = sphi 0, %s75
      %s79 = sphi 0, %s78
      %s95 = sphi 0, %s79
      %s101 = sphi 0, %s103
      %s104 = sphi 0, %s101
      %s105 = sphi 0, %s104
      %s121 = sphi 0, %s105
      %s129 = sphi 0, %s131
      %s132 = sphi 0, %s129
      %s133 = sphi 0, %s132
      %s149 = sphi 0, %s133
    $region4: #{tpu_custom_call.1} parent=1 // loop_header_branch
      %19 = sbr.rel (%p17) target = $region8
    $region5: #{tpu_custom_call.1} parent=1 // loop_body
      %s21 = ssub.s32 %s16, 1
      %s22 = ssub.s32 %s16, 2
      %s32 = sadd.s32 1, %s25
      %p33 = scmp.ge.s32.totalorder %s32, 1
      %s34 = scalar_select %p33, 0, %s32
      %s35 = sadd.s32 1, %s24
      %s36 = scalar_select %p33, %s35, %s24
      %p37 = scmp.ge.s32.totalorder %s36, 2
      %s38 = scalar_select %p37, 0, %s36
      %s39 = sadd.s32 1, %s23
      %s40 = scalar_select %p37, %s39, %s23
      %p41 = scmp.ge.s32.totalorder %s40, 1
      %s42 = scalar_select %p41, 0, %s40
      %s43 = ssub.s32 %s23, %s42
      %s44 = ssub.s32 %s25, %s34
      %s45 = sor.u32 %s43, %s44
      %p46 = scmp.eq.s32.totalorder %s45, 0
      %s48 = sadd.s32 %s47, 1
      %s49 = scalar_select %p46, %s47, %s48
      %p52 = pneg %p46
      %p53 = scmp.eq.s32.totalorder %s16, 1
      %p54 = por %p52, %p53
      %p55 = scmp.ne.s32.totalorder %s47, %s50
      %p56 = scmp.eq.s32.totalorder %s16, 0
      %p57 = por %p55, %p56
      %p58 = scmp.ne.s32.totalorder %s47, %s50
      %p59 = scmp.eq.s32.totalorder %s21, 1
      %p60 = por %p58, %p59
      %p61 = scmp.ne.s32.totalorder %s50, %s51
      %p62 = scmp.eq.s32.totalorder %s21, 0
      %p63 = por %p61, %p62
      %p64 = scmp.ne.s32.totalorder %s50, %s51
      %p65 = scmp.eq.s32.totalorder %s22, 1
      %p66 = por %p64, %p65
      %p68 = scmp.ne.s32.totalorder %s51, %s67
      %p69 = scmp.eq.s32.totalorder %s22, 0
      %p70 = por %p68, %p69
      %s71 = ssub.s32 %s25, %s34
      %s72 = ssub.s32 %s24, %s38
      %s73 = sor.u32 %s71, %s72
      %p74 = scmp.eq.s32.totalorder %s73, 0
      %s76 = sadd.s32 %s75, 1
      %s77 = scalar_select %p74, %s75, %s76
      %p80 = pneg %p74
      %p81 = scmp.eq.s32.totalorder %s16, 1
      %p82 = por %p80, %p81
      %p83 = scmp.ne.s32.totalorder %s75, %s78
      %p84 = scmp.eq.s32.totalorder %s16, 0
      %p85 = por %p83, %p84
      %p86 = scmp.ne.s32.totalorder %s75, %s78
      %p87 = scmp.eq.s32.totalorder %s21, 1
      %p88 = por %p86, %p87
      %p89 = scmp.ne.s32.totalorder %s78, %s79
      %p90 = scmp.eq.s32.totalorder %s21, 0
      %p91 = por %p89, %p90
      %p92 = scmp.ne.s32.totalorder %s78, %s79
      %p93 = scmp.eq.s32.totalorder %s22, 1
      %p94 = por %p92, %p93
      %p96 = scmp.ne.s32.totalorder %s79, %s95
      %p97 = scmp.eq.s32.totalorder %s22, 0
      %p98 = por %p96, %p97
      %s99 = ssub.s32 %s24, %s38
      %p100 = scmp.eq.s32.totalorder %s99, 0
      %s102 = sadd.s32 %s101, 1
      %s103 = scalar_select %p100, %s101, %s102
      %p106 = pneg %p100
      %p107 = scmp.eq.s32.totalorder %s16, 1
      %p108 = por %p106, %p107
      %p109 = scmp.ne.s32.totalorder %s101, %s104
      %p110 = scmp.eq.s32.totalorder %s16, 0
      %p111 = por %p109, %p110
      %p112 = scmp.ne.s32.totalorder %s101, %s104
      %p113 = scmp.eq.s32.totalorder %s21, 1
      %p114 = por %p112, %p113
      %p115 = scmp.ne.s32.totalorder %s104, %s105
      %p116 = scmp.eq.s32.totalorder %s21, 0
      %p117 = por %p115, %p116
      %p118 = scmp.ne.s32.totalorder %s104, %s105
      %p119 = scmp.eq.s32.totalorder %s22, 1
      %p120 = por %p118, %p119
      %p122 = scmp.ne.s32.totalorder %s105, %s121
      %p123 = scmp.eq.s32.totalorder %s22, 0
      %p124 = por %p122, %p123
      %s125 = ssub.s32 %s23, %s42
      %s126 = ssub.s32 %s24, %s38
      %s127 = sor.u32 %s125, %s126
      %p128 = scmp.eq.s32.totalorder %s127, 0
      %s130 = sadd.s32 %s129, 1
      %s131 = scalar_select %p128, %s129, %s130
      %p134 = pneg %p128
      %p135 = scmp.eq.s32.totalorder %s16, 1
      %p136 = por %p134, %p135
      %p137 = scmp.ne.s32.totalorder %s129, %s132
      %p138 = scmp.eq.s32.totalorder %s16, 0
      %p139 = por %p137, %p138
      %p140 = scmp.ne.s32.totalorder %s129, %s132
      %p141 = scmp.eq.s32.totalorder %s21, 1
      %p142 = por %p140, %p141
      %p143 = scmp.ne.s32.totalorder %s132, %s133
      %p144 = scmp.eq.s32.totalorder %s21, 0
      %p145 = por %p143, %p144
      %p146 = scmp.ne.s32.totalorder %s132, %s133
      %p147 = scmp.eq.s32.totalorder %s22, 1
      %p148 = por %p146, %p147
      %p150 = scmp.ne.s32.totalorder %s133, %s149
      %p151 = scmp.eq.s32.totalorder %s22, 0
      %p152 = por %p150, %p151
      %p153 = scmp.le.s32.totalorder 1, %s16
      %p154 = scmp.lt.s32.totalorder %s16, 3
      %p155 = pnand %p153, %p154
      %p156 = pneg %p155
      // Predicated region
      $region9: #{tpu_custom_call.1} parent=5 // pred_check
        _
      $region10: #{tpu_custom_call.1} parent=5 // pred_check_branch
        %158 = sbr.rel (%p155) target = $region12
      $region11: #{tpu_custom_call.1} parent=5 // pred_region
        %s159 = ssub.s32 %s16, 1
        // Predicated region
        $region13: #{tpu_custom_call.1} parent=11 // pred_check
          %p160 = pneg %p63
        $region14: #{tpu_custom_call.1} parent=11 // pred_check_branch
          %162 = sbr.rel (%p160) target = $region16
        $region15: #{tpu_custom_call.1} parent=11 // pred_region
          %s164 = ssub.s32 64, 64
          %165 = vsyncadd [#allocation4], %s164
          %s166 = sadd.s32 %s28, %s26
          %s167 = smul.addr %s166, 64
          %s168 = scalar_lea.hbm %s0, %s167
          %s170 = sshll.u32 [#allocation3], 4
          %s171 = int_to_ptr.vmem [resolvable:$true] %s170
          %173 = dma.hbm_to_vmem [thread:$0]  %s168, 64, %s171, [#allocation4]
        $region16: #{tpu_custom_call.1} parent=11 // pred_fallthru
          _
      $region12: #{tpu_custom_call.1} parent=5 // pred_fallthru
        _
      %p174 = scmp.lt.s32.totalorder %s16, 2
      // Predicated region
      $region17: #{tpu_custom_call.1} parent=5 // pred_check
        %p175 = pneg %p174
      $region18: #{tpu_custom_call.1} parent=5 // pred_check_branch
        %177 = sbr.rel (%p175) target = $region20
      $region19: #{tpu_custom_call.1} parent=5 // pred_region
        // Predicated region
        $region21: #{tpu_custom_call.1} parent=19 // pred_check
          %p178 = pneg %p85
        $region22: #{tpu_custom_call.1} parent=19 // pred_check_branch
          %180 = sbr.rel (%p178) target = $region24
        $region23: #{tpu_custom_call.1} parent=19 // pred_region
          %s181 = sand.u32 %s16, 1
          %s182 = scalar_lea.sflag [#allocation7], %s181
          %s183 = sand.u32 %s75, 1
          %s184 = smul.addr %s183, 64
          %s185 = scalar_lea.vmem [#allocation6], %s184
          %s186 = smul.u32 4, %s25
          %s187 = smul.u32 4, %s24
          %s189 = ssub.s32 1024, 1024
          %190 = vsyncadd %s182, %s189
          %s191 = smul.addr %s186, 8
          %s192 = sadd.s32 %s187, %s191
          %s193 = smul.addr %s192, 64
          %s194 = scalar_lea.hbm %s1, %s193
          %s195 = sshll.u32 %s185, 4
          %s196 = int_to_ptr.vmem [resolvable:$true] %s195
          %201 = dma.hbm_to_vmem [thread:$0]  %s194, 1024, %s196, %s182, 512, 256, 16
        $region24: #{tpu_custom_call.1} parent=19 // pred_fallthru
          _
        // Predicated region
        $region25: #{tpu_custom_call.1} parent=19 // pred_check
          %p202 = pneg %p111
        $region26: #{tpu_custom_call.1} parent=19 // pred_check_branch
          %204 = sbr.rel (%p202) target = $region28
        $region27: #{tpu_custom_call.1} parent=19 // pred_region
          %s205 = sand.u32 %s16, 1
          %s206 = scalar_lea.sflag [#allocation7], %s205
          %s207 = sand.u32 %s101, 1
          %s208 = smul.addr %s207, 4
          %s209 = scalar_lea.vmem [#allocation8], %s208
          %s210 = smul.u32 4, %s24
          %s212 = ssub.s32 64, 64
          %213 = vsyncadd %s206, %s212
          %s214 = smul.addr %s210, 16
          %s215 = scalar_lea.hbm %s2, %s214
          %s217 = sshll.u32 %s209, 4
          %s218 = int_to_ptr.vmem [resolvable:$true] %s217
          %220 = dma.hbm_to_vmem [thread:$0]  %s215, 64, %s218, %s206
        $region28: #{tpu_custom_call.1} parent=19 // pred_fallthru
          _
      $region20: #{tpu_custom_call.1} parent=5 // pred_fallthru
        _
      %p221 = scmp.le.s32.totalorder 1, %s16
      %p222 = scmp.lt.s32.totalorder %s16, 3
      %p223 = pnand %p221, %p222
      %p224 = pneg %p223
      // Predicated region
      $region29: #{tpu_custom_call.1} parent=5 // pred_check
        _
      $region30: #{tpu_custom_call.1} parent=5 // pred_check_branch
        %226 = sbr.rel (%p223) target = $region32
      $region31: #{tpu_custom_call.1} parent=5 // pred_region
        %s227 = ssub.s32 %s16, 1
        // Predicated region
        $region33: #{tpu_custom_call.1} parent=31 // pred_check
          %p228 = pneg %p63
        $region34: #{tpu_custom_call.1} parent=31 // pred_check_branch
          %230 = sbr.rel (%p228) target = $region36
        $region35: #{tpu_custom_call.1} parent=31 // pred_region
          %231 = dma.done [#allocation4], 64
        $region36: #{tpu_custom_call.1} parent=31 // pred_fallthru
          _
        %s232 = sand.u32 %s21, 1
        %s233 = scalar_lea.sflag [#allocation7], %s232
        %s234 = sand.u32 %s78, 1
        %s235 = smul.addr %s234, 64
        %s236 = scalar_lea.vmem [#allocation6], %s235
        // Predicated region
        $region37: #{tpu_custom_call.1} parent=31 // pred_check
          %p237 = pneg %p91
        $region38: #{tpu_custom_call.1} parent=31 // pred_check_branch
          %239 = sbr.rel (%p237) target = $region40
        $region39: #{tpu_custom_call.1} parent=31 // pred_region
          %240 = dma.done %s233, 1024
        $region40: #{tpu_custom_call.1} parent=31 // pred_fallthru
          _
        %s241 = sand.u32 %s21, 1
        %s242 = scalar_lea.sflag [#allocation7], %s241
        %s243 = sand.u32 %s104, 1
        %s244 = smul.addr %s243, 4
        %s245 = scalar_lea.vmem [#allocation8], %s244
        // Predicated region
        $region41: #{tpu_custom_call.1} parent=31 // pred_check
          %p246 = pneg %p117
        $region42: #{tpu_custom_call.1} parent=31 // pred_check_branch
          %248 = sbr.rel (%p246) target = $region44
        $region43: #{tpu_custom_call.1} parent=31 // pred_region
          %249 = dma.done %s242, 64
        $region44: #{tpu_custom_call.1} parent=31 // pred_fallthru
          _
        %p250 = pneg %p63
        %p251 = pneg %p60
        %s252 = sand.u32 %s21, 1
        %s253 = scalar_lea.sflag [#allocation7], %s252
        %s254 = sand.u32 %s78, 1
        %s255 = smul.addr %s254, 64
        %s256 = scalar_lea.vmem [#allocation6], %s255
        %p257 = pneg %p91
        %p258 = pneg %p88
        %s259 = sand.u32 %s21, 1
        %s260 = scalar_lea.sflag [#allocation7], %s259
        %s261 = sand.u32 %s104, 1
        %s262 = smul.addr %s261, 4
        %s263 = scalar_lea.vmem [#allocation8], %s262
        %p264 = pneg %p117
        %p265 = pneg %p114
        %p266 = pneg %p145
        %p267 = pneg %p142
        %s268 = sand.u32 %s132, 1
        %s269 = scalar_lea.sflag [#allocation5], %s268
        %s270 = sand.u32 %s132, 1
        %s271 = smul.addr %s270, 16
        %s272 = scalar_lea.vmem [#allocation9], %s271
        %s273 = smul.u32 4, %s28
        %s274 = smul.u32 4, %s27
        %s275 = smul.u32 4, %s27
        %s276 = smul.u32 4, %s27
        %p278 = scmp.eq.s32.totalorder %s28, 0
        // Predicated region
        $region45: #{tpu_custom_call.1} parent=31 // pred_check
          %p279 = pneg %p278
        $region46: #{tpu_custom_call.1} parent=31 // pred_check_branch
          %281 = sbr.rel (%p279) target = $region48
        $region47: #{tpu_custom_call.1} parent=31 // pred_region
          %v282 = vld [vmem:[%s245] sm:$0xf]
          %v284 = vlaneseq
          %v285 = vshrl.u32 %v284, 7
          %v286 = vsub.s32 0, %v285
          %v287 = vrot.slane %v282, %v286
          %v288 = vlaneseq
          %v289 = vshrl.u32 %v288, 7
          %v290 = vsub.s32 1, %v289
          %v291 = vrot.slane %v282, %v290
          %v292 = vlaneseq
          %v293 = vshrl.u32 %v292, 7
          %v294 = vsub.s32 2, %v293
          %v295 = vrot.slane %v282, %v294
          %v296 = vlaneseq
          %v297 = vshrl.u32 %v296, 7
          %v298 = vsub.s32 3, %v297
          %v299 = vrot.slane %v282, %v298
          %304 = vst [vmem:[#allocation2] sm:$0xff] %v287
          %305 = vst [vmem:[#allocation2 + $0x8] sm:$0xff] %v291
          %306 = vst [vmem:[#allocation2 + $0x10] sm:$0xff] %v295
          %307 = vst [vmem:[#allocation2 + $0x18] sm:$0xff] %v299
        $region48: #{tpu_custom_call.1} parent=31 // pred_fallthru
          _
        %v308 = vld [vmem:[#allocation2] sm:$0xff]
        %v309 = vld [vmem:[#allocation2 + $0x8] sm:$0xff]
        %v310 = vld [vmem:[#allocation2 + $0x10] sm:$0xff]
        %v311 = vld [vmem:[#allocation2 + $0x18] sm:$0xff]
        %v312 = vld [vmem:[#allocation3] sm:$0xf]
        %v313 = vld [vmem:[%s236] sm:$0xff]
        %v314 = vld [vmem:[%s236 + $0x8] sm:$0xff]
        %v315 = vld [vmem:[%s236 + $0x10] sm:$0xff]
        %v316 = vld [vmem:[%s236 + $0x18] sm:$0xff]
        %v317 = vld [vmem:[%s236 + $0x20] sm:$0xff]
        %v318 = vld [vmem:[%s236 + $0x28] sm:$0xff]
        %v319 = vld [vmem:[%s236 + $0x30] sm:$0xff]
        %v320 = vld [vmem:[%s236 + $0x38] sm:$0xff]
        %v329 = vunpack.c.l.b16 %v313
        %v330 = vunpack.c.h.b16 %v313
        %v331 = vunpack.c.l.b16 %v314
        %v332 = vunpack.c.h.b16 %v314
        %v333 = vunpack.c.l.b16 %v315
        %v334 = vunpack.c.h.b16 %v315
        %v335 = vunpack.c.l.b16 %v316
        %v336 = vunpack.c.h.b16 %v316
        %v337 = vunpack.c.l.b16 %v317
        %v338 = vunpack.c.h.b16 %v317
        %v339 = vunpack.c.l.b16 %v318
        %v340 = vunpack.c.h.b16 %v318
        %v341 = vunpack.c.l.b16 %v319
        %v342 = vunpack.c.h.b16 %v319
        %v343 = vunpack.c.l.b16 %v320
        %v344 = vunpack.c.h.b16 %v320
        %v345 = vpack.c.b16 %v333, %v329
        %v346 = vpack.c.b16 %v334, %v330
        %v347 = vpack.c.b16 %v335, %v331
        %v348 = vpack.c.b16 %v336, %v332
        %v349 = vpack.c.b16 %v341, %v337
        %v350 = vpack.c.b16 %v342, %v338
        %v351 = vpack.c.b16 %v343, %v339
        %v352 = vpack.c.b16 %v344, %v340
        %vm361 = vcmask 261120
        %v363 = vsel %vm361, %v312, 0
        %365 = vmatprep.subr.bf16.mxu0 %v346
        %366 = vmatpush1.bf16.msra.mxu0 %v345
        %367 = vmatprep.subr.bf16.mxu0 %v350
        %368 = vmatpush1.bf16.msra.mxu0 %v349
        %369 = vmatprep.subr.bf16.mxu0 0
        %370 = vmatpush1.bf16.msra.mxu0 0
        %371 = vmatprep.subr.bf16.mxu0 0
        %372 = vmatpush1.bf16.msra.mxu0 0
        %373 = vmatprep.subr.bf16.mxu0 0
        %374 = vmatpush1.bf16.msra.mxu0 0
        %375 = vmatprep.subr.bf16.mxu0 0
        %376 = vmatpush1.bf16.msra.mxu0 0
        %377 = vmatprep.subr.bf16.mxu0 0
        %378 = vmatpush1.bf16.msra.mxu0 0
        %379 = vmatprep.subr.bf16.mxu0 0
        %380 = vmatpush1.bf16.msra.mxu0 0
        %381 = vmatprep.subr.bf16.mxu0 0
        %382 = vmatpush1.bf16.msra.mxu0 0
        %383 = vmatprep.subr.bf16.mxu0 0
        %384 = vmatpush1.bf16.msra.mxu0 0
        %385 = vmatprep.subr.bf16.mxu0 0
        %386 = vmatpush1.bf16.msra.mxu0 0
        %387 = vmatprep.subr.bf16.mxu0 0
        %388 = vmatpush1.bf16.msra.mxu0 0
        %389 = vmatprep.subr.bf16.mxu0 0
        %390 = vmatpush1.bf16.msra.mxu0 0
        %391 = vmatprep.subr.bf16.mxu0 0
        %392 = vmatpush1.bf16.msra.mxu0 0
        %393 = vmatprep.subr.bf16.mxu0 0
        %394 = vmatpush1.bf16.msra.mxu0 0
        %395 = vmatprep.subr.bf16.mxu0 0
        %396 = vmatpush1.bf16.msra.mxu0 0
        %397 = vmatprep.mubr.bf16.mxu0 0
        %398 = vmatmul.mubr.bf16.gmra.mrb[0].mxu0 %v363
        %v399 = vpop.f32.mrb[0].mxu0
        %v400 = vadd.f32 0.0, %v399
        %v401 = vpop.f32.mrb[0].mxu0
        %v402 = vadd.f32 0.0, %v401
        %v403 = vpop.f32.mrb[0].mxu0
        %v404 = vpop.f32.mrb[0].mxu0
        %405 = vdwg.mxu0
        %406 = vmatprep.subr.bf16.mxu0 %v348
        %407 = vmatpush1.bf16.msra.mxu0 %v347
        %408 = vmatprep.subr.bf16.mxu0 %v352
        %409 = vmatpush1.bf16.msra.mxu0 %v351
        %410 = vmatprep.subr.bf16.mxu0 0
        %411 = vmatpush1.bf16.msra.mxu0 0
        %412 = vmatprep.subr.bf16.mxu0 0
        %413 = vmatpush1.bf16.msra.mxu0 0
        %414 = vmatprep.subr.bf16.mxu0 0
        %415 = vmatpush1.bf16.msra.mxu0 0
        %416 = vmatprep.subr.bf16.mxu0 0
        %417 = vmatpush1.bf16.msra.mxu0 0
        %418 = vmatprep.subr.bf16.mxu0 0
        %419 = vmatpush1.bf16.msra.mxu0 0
        %420 = vmatprep.subr.bf16.mxu0 0
        %421 = vmatpush1.bf16.msra.mxu0 0
        %422 = vmatprep.subr.bf16.mxu0 0
        %423 = vmatpush1.bf16.msra.mxu0 0
        %424 = vmatprep.subr.bf16.mxu0 0
        %425 = vmatpush1.bf16.msra.mxu0 0
        %426 = vmatprep.subr.bf16.mxu0 0
        %427 = vmatpush1.bf16.msra.mxu0 0
        %428 = vmatprep.subr.bf16.mxu0 0
        %429 = vmatpush1.bf16.msra.mxu0 0
        %430 = vmatprep.subr.bf16.mxu0 0
        %431 = vmatpush1.bf16.msra.mxu0 0
        %432 = vmatprep.subr.bf16.mxu0 0
        %433 = vmatpush1.bf16.msra.mxu0 0
        %434 = vmatprep.subr.bf16.mxu0 0
        %435 = vmatpush1.bf16.msra.mxu0 0
        %436 = vmatprep.subr.bf16.mxu0 0
        %437 = vmatpush1.bf16.msra.mxu0 0
        %438 = vmatprep.mubr.bf16.mxu0 0
        %439 = vmatmul.mubr.bf16.gmra.mrb[0].mxu0 %v363
        %v440 = vpop.f32.mrb[0].mxu0
        %v441 = vadd.f32 0.0, %v440
        %v442 = vpop.f32.mrb[0].mxu0
        %v443 = vadd.f32 0.0, %v442
        %v444 = vpop.f32.mrb[0].mxu0
        %v445 = vpop.f32.mrb[0].mxu0
        %446 = vdwg.mxu0
        %v447 = vadd.f32 %v308, %v400
        %v448 = vadd.f32 %v309, %v402
        %v449 = vadd.f32 %v310, %v441
        %v450 = vadd.f32 %v311, %v443
        %451 = vst [vmem:[#allocation2] sm:$0xff] %v447
        %452 = vst [vmem:[#allocation2 + $0x8] sm:$0xff] %v448
        %453 = vst [vmem:[#allocation2 + $0x10] sm:$0xff] %v449
        %454 = vst [vmem:[#allocation2 + $0x18] sm:$0xff] %v450
        // Predicated region
        $region49: #{tpu_custom_call.1} parent=31 // pred_check
          %p455 = pneg %p278
        $region50: #{tpu_custom_call.1} parent=31 // pred_check_branch
          %457 = sbr.rel (%p455) target = $region52
        $region51: #{tpu_custom_call.1} parent=31 // pred_region
          %v458 = vld [vmem:[#allocation2] sm:$0xff]
          %v459 = vld [vmem:[#allocation2 + $0x8] sm:$0xff]
          %v460 = vld [vmem:[#allocation2 + $0x10] sm:$0xff]
          %v461 = vld [vmem:[#allocation2 + $0x18] sm:$0xff]
          %v462 = vmax.f32 %v458, 0.0
          %v463 = vmax.f32 %v459, 0.0
          %v464 = vmax.f32 %v460, 0.0
          %v465 = vmax.f32 %v461, 0.0
          %v466 = vpack.c.bf16 %v462, %v462
          %v467 = vpack.c.bf16 %v463, %v463
          %v468 = vpack.c.bf16 %v464, %v464
          %v469 = vpack.c.bf16 %v465, %v465
          %v474 = vunpack.c.l.b16 %v466
          %v475 = vunpack.c.l.b16 %v467
          %v476 = vunpack.c.l.b16 %v468
          %v477 = vunpack.c.l.b16 %v469
          %v478 = vpack.c.b16 %v475, %v474
          %v479 = vpack.c.b16 %v477, %v476
          %482 = vst [vmem:[%s272] sm:$0xff] %v478
          %483 = vst [vmem:[%s272 + $0x8] sm:$0xff] %v479
        $region52: #{tpu_custom_call.1} parent=31 // pred_fallthru
          _
        %s484 = sand.u32 %s132, 1
        %s485 = scalar_lea.sflag [#allocation5], %s484
        %s486 = sand.u32 %s132, 1
        %s487 = smul.addr %s486, 16
        %s488 = scalar_lea.vmem [#allocation9], %s487
        // Predicated region
        $region53: #{tpu_custom_call.1} parent=31 // pred_check
          %p489 = pneg %p142
        $region54: #{tpu_custom_call.1} parent=31 // pred_check_branch
          %491 = sbr.rel (%p489) target = $region56
        $region55: #{tpu_custom_call.1} parent=31 // pred_region
          %s492 = smul.u32 4, %s27
          %s494 = ssub.s32 256, 256
          %495 = vsyncadd %s485, %s494
          %s496 = smul.addr %s26, 8
          %s497 = sadd.s32 %s492, %s496
          %s498 = smul.addr %s497, 64
          %s499 = scalar_lea.hbm %s3, %s498
          %s501 = sshll.u32 %s488, 4
          %s502 = int_to_ptr.vmem [resolvable:$true] %s501
          %504 = dma.vmem_to_hbm [thread:$0]  %s502, 256, %s499, %s485
        $region56: #{tpu_custom_call.1} parent=31 // pred_fallthru
          _
      $region32: #{tpu_custom_call.1} parent=5 // pred_fallthru
        _
      %p505 = scmp.le.s32.totalorder 2, %s16
      // Predicated region
      $region57: #{tpu_custom_call.1} parent=5 // pred_check
        %p506 = pneg %p505
      $region58: #{tpu_custom_call.1} parent=5 // pred_check_branch
        %508 = sbr.rel (%p506) target = $region60
      $region59: #{tpu_custom_call.1} parent=5 // pred_region
        %s509 = ssub.s32 %s16, 2
        // Predicated region
        $region61: #{tpu_custom_call.1} parent=59 // pred_check
          %p510 = pneg %p148
        $region62: #{tpu_custom_call.1} parent=59 // pred_check_branch
          %512 = sbr.rel (%p510) target = $region64
        $region63: #{tpu_custom_call.1} parent=59 // pred_region
          %s513 = sand.u32 %s133, 1
          %s514 = scalar_lea.sflag [#allocation5], %s513
          %s515 = sand.u32 %s133, 1
          %s516 = smul.addr %s515, 16
          %s517 = scalar_lea.vmem [#allocation9], %s516
          %518 = dma.done %s514, 256
        $region64: #{tpu_custom_call.1} parent=59 // pred_fallthru
          _
      $region60: #{tpu_custom_call.1} parent=5 // pred_fallthru
        _
    $region6: #{tpu_custom_call.1} parent=1 // loop_footer
      %s20 = sadd.s32 1, %s16
    $region7: #{tpu_custom_call.1} parent=1 // loop_footer_branch
      %15 = sbr.rel target = $region3
    $region8: #{tpu_custom_call.1} parent=1 // loop_exit
      _
    %519 = vsyncpa [#allocation4], 1
    %s520 = scalar_lea.sflag [#allocation4], 1
    %521 = vsyncpa %s520, 1
    %522 = vsyncpa [#allocation7], 1
    %s523 = scalar_lea.sflag [#allocation7], 1
    %524 = vsyncpa %s523, 1
    %525 = vsyncpa [#allocation5], 1
    %s526 = scalar_lea.sflag [#allocation5], 1
    %527 = vsyncpa %s526, 1

</llo_original>
